<compile_context>
chip_gen: v7x
topology: tpu7x:2x2x1
jax: 0.10.0
libtpu: 0.0.40
codegen_flags: <defaults>
</compile_context>

<pallas_src>
import functools

import jax
import jax.numpy as jnp
from jax.experimental import pallas as pl
from jax.experimental.pallas import tpu as pltpu

_LN_EPS = 1e-5


# ----------------------------- Pallas kernel -------------------------------

def _make_fused_mlp_kernel(num_hidden, stacked):
    """Fused kernel body: `num_hidden` x (linear + relu + LayerNorm) + final linear.

    Ref order (stacked=True):
        x, w_stack (L,Fin,Fh), aff_stack (L,3,Fh), w_last (Fh,Fout), b_last (1,Fout), out
    Ref order (stacked=False):
        x, [w_i (Fin,Fh), aff_i (3,Fh)] * L, w_last, b_last, out
    aff rows: [bias, gamma, beta].
    """

    def kernel(*refs):
        x_ref = refs[0]
        o_ref = refs[-1]
        y = x_ref[...]                                   # (tile_n, Fin), f32

        for l in range(num_hidden):
            if stacked:
                w = refs[1][l]                           # (Fin, Fh)
                aff = refs[2][l]                         # (3, Fh)
            else:
                w = refs[1 + 2 * l][...]
                aff = refs[2 + 2 * l][...]
            # Linear (weights pre-transposed -> plain x @ W on the MXU) + bias + ReLU.
            y = jnp.dot(y, w, preferred_element_type=jnp.float32)
            y = jnp.maximum(y + aff[0:1, :], 0.0)
            # LayerNorm over features. Two-pass variance: exact torch semantics and the
            # (y - mean) term is reused for the normalization, so it costs the same
            # number of cross-lane reduces as the one-pass E[y^2]-mean^2 form.
            mean = jnp.mean(y, axis=-1, keepdims=True)
            d = y - mean
            var = jnp.mean(d * d, axis=-1, keepdims=True)
            y = d * jax.lax.rsqrt(var + _LN_EPS)
            y = y * aff[1:2, :] + aff[2:3, :]
            # dropout: identity in eval mode.
            # TODO(synk): training-mode dropout would use pltpu.prng_seed /
            # pltpu.stateful_bernoulli here.

        last = 3 if stacked else 1 + 2 * num_hidden
        w_ref = refs[last]
        b_ref = refs[last + 1]
        y = jnp.dot(y, w_ref[...], preferred_element_type=jnp.float32) + b_ref[...]
        o_ref[...] = y.astype(o_ref.dtype)

    return kernel


# ------------------------------ JAX wrapper ---------------------------------

def prepare_params(params):
    """One-time layout plumbing: transpose weights to (Fin, Fout), pack bias/gamma/beta,
    and stack the hidden-layer operands into single arrays when shapes allow."""
    hidden = params[:-1]
    last = params[-1]
    wts = [jnp.asarray(l["w"]).T for l in hidden]                              # (Fin, Fout)
    affs = [jnp.stack([l["b"], l["gamma"], l["beta"]], 0) for l in hidden]     # (3, Fout)
    packed = {
        "last_wt": jnp.asarray(last["w"]).T,                                   # (Fh, Fout)
        "last_b": jnp.asarray(last["b"]).reshape(1, -1),                       # (1, Fout)
    }
    if wts and all(w.shape == wts[0].shape for w in wts):
        packed["w_stack"] = jnp.stack(wts, 0)                                  # (L, Fin, Fout)
        packed["aff_stack"] = jnp.stack(affs, 0)                               # (L, 3, Fout)
    else:
        packed["wts"] = wts
        packed["affs"] = affs
    return packed


def _mlp_from_packed(x, packed):
    """Pure-JAX path (small-N fallback; XLA fuses this fine)."""
    if "w_stack" in packed:
        pairs = [(packed["w_stack"][l], packed["aff_stack"][l])
                 for l in range(packed["w_stack"].shape[0])]
    else:
        pairs = list(zip(packed["wts"], packed["affs"]))
    y = x
    for wt, aff in pairs:
        y = jnp.maximum(y @ wt + aff[0], 0.0)
        mu = jnp.mean(y, axis=-1, keepdims=True)
        d = y - mu
        var = jnp.mean(d * d, axis=-1, keepdims=True)
        y = d * jax.lax.rsqrt(var + _LN_EPS) * aff[1] + aff[2]
    return y @ packed["last_wt"] + packed["last_b"][0]


def _pick_tile(n, row_tile):
    """Row-tile picker: single block for small N; otherwise >= 2 grid steps
    (so v7x's second TensorCore gets work) capped at row_tile, 8-aligned."""
    if n <= 512:
        return n
    tile = min(row_tile, -(-n // 2))
    tile = ((tile + 7) // 8) * 8
    return min(tile, n)


@functools.partial(jax.jit, static_argnames=("row_tile", "min_pallas_rows"))
def mlp_forward(x, packed, row_tile=1024, min_pallas_rows=0):
    n, fin = x.shape
    fout = packed["last_wt"].shape[1]

    # Tiny batches are pure launch/DMA-latency overhead; use the fused-XLA path there.
    # (Demo forces the Pallas path with min_pallas_rows=0; production might use ~512.)
    if n < min_pallas_rows:
        return _mlp_from_packed(x, packed)

    tile_n = _pick_tile(n, row_tile)
    grid = (pl.cdiv(n, tile_n),)

    stacked = "w_stack" in packed
    args = [x]
    in_specs = [pl.BlockSpec((tile_n, fin), lambda i: (i, 0))]
    if stacked:
        num_hidden = packed["w_stack"].shape[0]
        args += [packed["w_stack"], packed["aff_stack"]]
        in_specs += [
            pl.BlockSpec(packed["w_stack"].shape, lambda i: (0, 0, 0)),
            pl.BlockSpec(packed["aff_stack"].shape, lambda i: (0, 0, 0)),
        ]
    else:
        num_hidden = len(packed["wts"])
        for wt, aff in zip(packed["wts"], packed["affs"]):
            args += [wt, aff]
            in_specs += [
                pl.BlockSpec(wt.shape, lambda i: (0, 0)),
                pl.BlockSpec(aff.shape, lambda i: (0, 0)),
            ]
    args += [packed["last_wt"], packed["last_b"]]
    in_specs += [
        pl.BlockSpec(packed["last_wt"].shape, lambda i: (0, 0)),
        pl.BlockSpec(packed["last_b"].shape, lambda i: (0, 0)),
    ]

    return pl.pallas_call(
        _make_fused_mlp_kernel(num_hidden, stacked),
        out_shape=jax.ShapeDtypeStruct((n, fout), jnp.float32),
        grid=grid,
        in_specs=in_specs,
        out_specs=pl.BlockSpec((tile_n, fout), lambda i: (i, 0)),
        compiler_params=pltpu.CompilerParams(
            dimension_semantics=("parallel",),      # shards batch over v7x's 2 TCs
            vmem_limit_bytes=32 * 1024 * 1024,      # binding only on v5e (16 MiB default)
        ),
    )(*args)


def init_linear_params(key, fin, fout):
    """Matches torch nn.Linear default init: U[-1/sqrt(fin), 1/sqrt(fin)]."""
    kw, kb = jax.random.split(key)
    bound = 1.0 / (fin ** 0.5)
    w = jax.random.uniform(kw, (fout, fin), jnp.float32, -bound, bound)
    b = jax.random.uniform(kb, (fout,), jnp.float32, -bound, bound)
    return w, b


# -------------------------------- main --------------------------------------

if __name__ == "__main__":
    # MLP(in_channels=32, hidden_channels=32, out_channels=16, num_layers=3,
    #     Normalization='ln', InputNorm=False), eval mode.
    in_channels, hidden_channels, out_channels, num_layers = 32, 32, 16, 3
    batch = 8

    key = jax.random.PRNGKey(0)
    keys = jax.random.split(key, num_layers + 1)

    params = []
    w0, b0 = init_linear_params(keys[0], in_channels, hidden_channels)
    params.append({"w": w0, "b": b0,
                   "gamma": jnp.ones((hidden_channels,), jnp.float32),
                   "beta": jnp.zeros((hidden_channels,), jnp.float32)})
    for li in range(1, num_layers - 1):
        w, b = init_linear_params(keys[li], hidden_channels, hidden_channels)
        params.append({"w": w, "b": b,
                       "gamma": jnp.ones((hidden_channels,), jnp.float32),
                       "beta": jnp.zeros((hidden_channels,), jnp.float32)})
    wl, bl = init_linear_params(keys[num_layers - 1], hidden_channels, out_channels)
    params.append({"w": wl, "b": bl})

    x = jax.random.normal(keys[-1], (batch, in_channels), jnp.float32)

    packed = prepare_params(params)
    out = mlp_forward(x, packed)          # min_pallas_rows=0 -> Pallas path runs
    out = jax.block_until_ready(out)

    # Pure-JAX reference (torch semantics: x @ W.T + b, two-pass LayerNorm).
    ref = x
    for layer in params[:-1]:
        y = ref @ layer["w"].T + layer["b"]
        y = jnp.maximum(y, 0.0)
        mu = jnp.mean(y, axis=-1, keepdims=True)
        var = jnp.mean((y - mu) ** 2, axis=-1, keepdims=True)
        ref = (y - mu) / jnp.sqrt(var + _LN_EPS) * layer["gamma"] + layer["beta"]
    ref = ref @ params[-1]["w"].T + params[-1]["b"]

    assert out.shape == (batch, out_channels), out.shape
    assert jnp.allclose(out, ref, atol=1e-4, rtol=1e-4), float(jnp.max(jnp.abs(out - ref)))

    print("KERNEL_OK")
</pallas_src>

<mosaic_0001>
module attributes {stable_mosaic.version = 11 : i64} {
  func.func @kernel(%arg0: i32, %arg1: memref<8x32xf32, #tpu.memory_space<vmem>>, %arg2: memref<2x32x32xf32, #tpu.memory_space<vmem>>, %arg3: memref<2x3x32xf32, #tpu.memory_space<vmem>>, %arg4: memref<32x16xf32, #tpu.memory_space<vmem>>, %arg5: memref<1x16xf32, #tpu.memory_space<vmem>>, %arg6: memref<8x16xf32, #tpu.memory_space<vmem>>) attributes {dimension_semantics = [#tpu.dimension_semantics<parallel>], iteration_bounds = array<i64: 1>, scalar_prefetch = 0 : i64, scratch_operands = 0 : i64, tpu.core_type = #tpu.core_type<tc>, window_params = [{transform_indices = @transform_0, window_bounds = array<i64: 8, 32>}, {pipeline_mode = #tpu.pipeline_mode<synchronous>, transform_indices = @transform_1, window_bounds = array<i64: 2, 32, 32>}, {pipeline_mode = #tpu.pipeline_mode<synchronous>, transform_indices = @transform_2, window_bounds = array<i64: 2, 3, 32>}, {pipeline_mode = #tpu.pipeline_mode<synchronous>, transform_indices = @transform_3, window_bounds = array<i64: 32, 16>}, {pipeline_mode = #tpu.pipeline_mode<synchronous>, transform_indices = @transform_4, window_bounds = array<i64: 1, 16>}, {transform_indices = @transform_5, window_bounds = array<i64: 8, 16>}]} {
    %c0 = arith.constant 0 : index
    %c0_0 = arith.constant 0 : index
    %0 = vector.load %arg1[%c0, %c0_0] : memref<8x32xf32, #tpu.memory_space<vmem>>, vector<8x32xf32>
    %c0_1 = arith.constant 0 : index
    %c0_2 = arith.constant 0 : index
    %c0_3 = arith.constant 0 : index
    %1 = vector.load %arg2[%c0_1, %c0_2, %c0_3] : memref<2x32x32xf32, #tpu.memory_space<vmem>>, vector<1x32x32xf32>
    %2 = vector.shape_cast %1 : vector<1x32x32xf32> to vector<32x32xf32>
    %c0_4 = arith.constant 0 : index
    %c0_5 = arith.constant 0 : index
    %c0_6 = arith.constant 0 : index
    %3 = vector.load %arg3[%c0_4, %c0_5, %c0_6] : memref<2x3x32xf32, #tpu.memory_space<vmem>>, vector<1x3x32xf32>
    %4 = vector.shape_cast %3 : vector<1x3x32xf32> to vector<3x32xf32>
    %cst = arith.constant dense<0.000000e+00> : vector<8x32xf32>
    %5 = tpu.matmul %0, %2, %cst {dimension_numbers = #tpu.dot_dimension_numbers<[1], [0], [0], [1], [0, 0, 1, 1], [], []>} : vector<8x32xf32>, vector<32x32xf32>, vector<8x32xf32> -> vector<8x32xf32>
    %6 = vector.extract_strided_slice %4 {offsets = [0, 0], sizes = [1, 32], strides = [1, 1]} : vector<3x32xf32> to vector<1x32xf32>
    %7 = vector.broadcast %6 : vector<1x32xf32> to vector<8x32xf32>
    %8 = arith.addf %5, %7 : vector<8x32xf32>
    %cst_7 = arith.constant 0.000000e+00 : f32
    %9 = vector.broadcast %cst_7 : f32 to vector<8x32xf32>
    %10 = arith.maximumf %8, %9 : vector<8x32xf32>
    %cst_8 = arith.constant dense<0.000000e+00> : vector<8xf32>
    %11 = vector.multi_reduction <add>, %10, %cst_8 [1] : vector<8x32xf32> to vector<8xf32>
    %12 = vector.shape_cast %11 : vector<8xf32> to vector<8x1xf32>
    %cst_9 = arith.constant 3.200000e+01 : f32
    %13 = vector.broadcast %cst_9 : f32 to vector<8x1xf32>
    %14 = arith.divf %12, %13 : vector<8x1xf32>
    %15 = vector.broadcast %14 : vector<8x1xf32> to vector<8x32xf32>
    %16 = arith.subf %10, %15 : vector<8x32xf32>
    %17 = arith.mulf %16, %16 : vector<8x32xf32>
    %cst_10 = arith.constant dense<0.000000e+00> : vector<8xf32>
    %18 = vector.multi_reduction <add>, %17, %cst_10 [1] : vector<8x32xf32> to vector<8xf32>
    %19 = vector.shape_cast %18 : vector<8xf32> to vector<8x1xf32>
    %cst_11 = arith.constant 3.200000e+01 : f32
    %20 = vector.broadcast %cst_11 : f32 to vector<8x1xf32>
    %21 = arith.divf %19, %20 : vector<8x1xf32>
    %cst_12 = arith.constant 9.99999974E-6 : f32
    %22 = vector.broadcast %cst_12 : f32 to vector<8x1xf32>
    %23 = arith.addf %21, %22 : vector<8x1xf32>
    %24 = math.rsqrt %23 : vector<8x1xf32>
    %25 = vector.broadcast %24 : vector<8x1xf32> to vector<8x32xf32>
    %26 = arith.mulf %16, %25 : vector<8x32xf32>
    %27 = vector.extract_strided_slice %4 {offsets = [1, 0], sizes = [1, 32], strides = [1, 1]} : vector<3x32xf32> to vector<1x32xf32>
    %28 = vector.broadcast %27 : vector<1x32xf32> to vector<8x32xf32>
    %29 = arith.mulf %26, %28 : vector<8x32xf32>
    %30 = vector.extract_strided_slice %4 {offsets = [2, 0], sizes = [1, 32], strides = [1, 1]} : vector<3x32xf32> to vector<1x32xf32>
    %31 = vector.broadcast %30 : vector<1x32xf32> to vector<8x32xf32>
    %32 = arith.addf %29, %31 : vector<8x32xf32>
    %c1 = arith.constant 1 : index
    %c0_13 = arith.constant 0 : index
    %c0_14 = arith.constant 0 : index
    %33 = vector.load %arg2[%c1, %c0_13, %c0_14] : memref<2x32x32xf32, #tpu.memory_space<vmem>>, vector<1x32x32xf32>
    %34 = vector.shape_cast %33 : vector<1x32x32xf32> to vector<32x32xf32>
    %c1_15 = arith.constant 1 : index
    %c0_16 = arith.constant 0 : index
    %c0_17 = arith.constant 0 : index
    %35 = vector.load %arg3[%c1_15, %c0_16, %c0_17] : memref<2x3x32xf32, #tpu.memory_space<vmem>>, vector<1x3x32xf32>
    %36 = vector.shape_cast %35 : vector<1x3x32xf32> to vector<3x32xf32>
    %cst_18 = arith.constant dense<0.000000e+00> : vector<8x32xf32>
    %37 = tpu.matmul %32, %34, %cst_18 {dimension_numbers = #tpu.dot_dimension_numbers<[1], [0], [0], [1], [0, 0, 1, 1], [], []>} : vector<8x32xf32>, vector<32x32xf32>, vector<8x32xf32> -> vector<8x32xf32>
    %38 = vector.extract_strided_slice %36 {offsets = [0, 0], sizes = [1, 32], strides = [1, 1]} : vector<3x32xf32> to vector<1x32xf32>
    %39 = vector.broadcast %38 : vector<1x32xf32> to vector<8x32xf32>
    %40 = arith.addf %37, %39 : vector<8x32xf32>
    %cst_19 = arith.constant 0.000000e+00 : f32
    %41 = vector.broadcast %cst_19 : f32 to vector<8x32xf32>
    %42 = arith.maximumf %40, %41 : vector<8x32xf32>
    %cst_20 = arith.constant dense<0.000000e+00> : vector<8xf32>
    %43 = vector.multi_reduction <add>, %42, %cst_20 [1] : vector<8x32xf32> to vector<8xf32>
    %44 = vector.shape_cast %43 : vector<8xf32> to vector<8x1xf32>
    %cst_21 = arith.constant 3.200000e+01 : f32
    %45 = vector.broadcast %cst_21 : f32 to vector<8x1xf32>
    %46 = arith.divf %44, %45 : vector<8x1xf32>
    %47 = vector.broadcast %46 : vector<8x1xf32> to vector<8x32xf32>
    %48 = arith.subf %42, %47 : vector<8x32xf32>
    %49 = arith.mulf %48, %48 : vector<8x32xf32>
    %cst_22 = arith.constant dense<0.000000e+00> : vector<8xf32>
    %50 = vector.multi_reduction <add>, %49, %cst_22 [1] : vector<8x32xf32> to vector<8xf32>
    %51 = vector.shape_cast %50 : vector<8xf32> to vector<8x1xf32>
    %cst_23 = arith.constant 3.200000e+01 : f32
    %52 = vector.broadcast %cst_23 : f32 to vector<8x1xf32>
    %53 = arith.divf %51, %52 : vector<8x1xf32>
    %cst_24 = arith.constant 9.99999974E-6 : f32
    %54 = vector.broadcast %cst_24 : f32 to vector<8x1xf32>
    %55 = arith.addf %53, %54 : vector<8x1xf32>
    %56 = math.rsqrt %55 : vector<8x1xf32>
    %57 = vector.broadcast %56 : vector<8x1xf32> to vector<8x32xf32>
    %58 = arith.mulf %48, %57 : vector<8x32xf32>
    %59 = vector.extract_strided_slice %36 {offsets = [1, 0], sizes = [1, 32], strides = [1, 1]} : vector<3x32xf32> to vector<1x32xf32>
    %60 = vector.broadcast %59 : vector<1x32xf32> to vector<8x32xf32>
    %61 = arith.mulf %58, %60 : vector<8x32xf32>
    %62 = vector.extract_strided_slice %36 {offsets = [2, 0], sizes = [1, 32], strides = [1, 1]} : vector<3x32xf32> to vector<1x32xf32>
    %63 = vector.broadcast %62 : vector<1x32xf32> to vector<8x32xf32>
    %64 = arith.addf %61, %63 : vector<8x32xf32>
    %c0_25 = arith.constant 0 : index
    %c0_26 = arith.constant 0 : index
    %65 = vector.load %arg4[%c0_25, %c0_26] : memref<32x16xf32, #tpu.memory_space<vmem>>, vector<32x16xf32>
    %cst_27 = arith.constant dense<0.000000e+00> : vector<8x16xf32>
    %66 = tpu.matmul %64, %65, %cst_27 {dimension_numbers = #tpu.dot_dimension_numbers<[1], [0], [0], [1], [0, 0, 1, 1], [], []>} : vector<8x32xf32>, vector<32x16xf32>, vector<8x16xf32> -> vector<8x16xf32>
    %c0_28 = arith.constant 0 : index
    %c0_29 = arith.constant 0 : index
    %67 = vector.load %arg5[%c0_28, %c0_29] : memref<1x16xf32, #tpu.memory_space<vmem>>, vector<1x16xf32>
    %68 = vector.broadcast %67 : vector<1x16xf32> to vector<8x16xf32>
    %69 = arith.addf %66, %68 : vector<8x16xf32>
    %c0_30 = arith.constant 0 : index
    %c0_31 = arith.constant 0 : index
    %70 = vector.load %arg6[%c0_30, %c0_31] : memref<8x16xf32, #tpu.memory_space<vmem>>, vector<8x16xf32>
    tpu.vector_store %arg6[%c0_30, %c0_31], %69 {strides = array<i32>} : memref<8x16xf32, #tpu.memory_space<vmem>>, vector<8x16xf32>,
    return
  }
  func.func @transform_0(%arg0: i32) -> (i32, i32) {
    %c0_i32 = arith.constant 0 : i32
    %c0_i32_0 = arith.constant 0 : i32
    return %arg0, %c0_i32 : i32, i32
  }
  func.func @transform_1(%arg0: i32) -> (i32, i32, i32) {
    %c0_i32 = arith.constant 0 : i32
    %c0_i32_0 = arith.constant 0 : i32
    %c0_i32_1 = arith.constant 0 : i32
    %c0_i32_2 = arith.constant 0 : i32
    return %c0_i32, %c0_i32_0, %c0_i32_1 : i32, i32, i32
  }
  func.func @transform_2(%arg0: i32) -> (i32, i32, i32) {
    %c0_i32 = arith.constant 0 : i32
    %c0_i32_0 = arith.constant 0 : i32
    %c0_i32_1 = arith.constant 0 : i32
    %c0_i32_2 = arith.constant 0 : i32
    return %c0_i32, %c0_i32_0, %c0_i32_1 : i32, i32, i32
  }
  func.func @transform_3(%arg0: i32) -> (i32, i32) {
    %c0_i32 = arith.constant 0 : i32
    %c0_i32_0 = arith.constant 0 : i32
    %c0_i32_1 = arith.constant 0 : i32
    return %c0_i32, %c0_i32_0 : i32, i32
  }
  func.func @transform_4(%arg0: i32) -> (i32, i32) {
    %c0_i32 = arith.constant 0 : i32
    %c0_i32_0 = arith.constant 0 : i32
    %c0_i32_1 = arith.constant 0 : i32
    return %c0_i32, %c0_i32_0 : i32, i32
  }
  func.func @transform_5(%arg0: i32) -> (i32, i32) {
    %c0_i32 = arith.constant 0 : i32
    %c0_i32_0 = arith.constant 0 : i32
    return %arg0, %c0_i32 : i32, i32
  }
}

</mosaic_0001>

<llo_original>
// kernel: mlp_forward.1
$region0: #{mlp_forward.1}
  #allocation0 [shape = 'u32[]', space=smem, size = 0x4, offset = 0x4, fixed_abs, tag = 'smem constant byte address 0x4 - core index']
  #allocation1 [shape = 'u32[144,128]{1,0:T(1,128)}', space=vmem, size = 0x12000, scoped, tag = 'internal scratch']
  %s0 = inlined_call_operand.vmem [shape: f32[8,32], index: 0, kind: input, shape index: {}]
  %s1 = inlined_call_operand.vmem [shape: f32[2,32,32], index: 1, kind: input, shape index: {}]
  %s2 = inlined_call_operand.vmem [shape: f32[2,3,32], index: 2, kind: input, shape index: {}]
  %s3 = inlined_call_operand.vmem [shape: f32[32,16], index: 3, kind: input, shape index: {}]
  %s4 = inlined_call_operand.vmem [shape: f32[1,16], index: 4, kind: input, shape index: {}]
  %s5 = inlined_call_operand.hbm [shape: f32[8,16], index: 5, kind: output, shape index: {}]
  %s6 = sld [smem:[#allocation0]]
  $region30: #{mlp_forward.1} parent=0
    _
  %s8 = ssub.s32 1, %s6
  %s9 = scalar_select 0, %s8, %s6
  $region1: #{mlp_forward.1} parent=0
    #allocation2 [shape = 'u8[4096]{0}', space=vmem, size = 0x1000, scoped, tag = 'output window, operand 0, single buffered']
    #allocation3 [shape = 's32[1]{0}', space=sflag, size = 0x4, scoped, tag = 'scoped memory for mlp_forward.1']
    %10 = vsyncpa [#allocation3], 0
    // Predicated region
    $region2: #{mlp_forward.1} parent=1 // pred_check
      _
    $region3: #{mlp_forward.1} parent=1 // pred_check_branch
      %12 = sbr.rel (0) target = $region5
    $region4: #{mlp_forward.1} parent=1 // pred_region
      _
    $region5: #{mlp_forward.1} parent=1 // pred_fallthru
      _
    // Predicated region
    $region6: #{mlp_forward.1} parent=1 // pred_check
      _
    $region7: #{mlp_forward.1} parent=1 // pred_check_branch
      %14 = sbr.rel (0) target = $region9
    $region8: #{mlp_forward.1} parent=1 // pred_region
      _
    $region9: #{mlp_forward.1} parent=1 // pred_fallthru
      _
    // Predicated region
    $region10: #{mlp_forward.1} parent=1 // pred_check
      _
    $region11: #{mlp_forward.1} parent=1 // pred_check_branch
      %16 = sbr.rel (0) target = $region13
    $region12: #{mlp_forward.1} parent=1 // pred_region
      _
    $region13: #{mlp_forward.1} parent=1 // pred_fallthru
      _
    // Predicated region
    $region14: #{mlp_forward.1} parent=1 // pred_check
      _
    $region15: #{mlp_forward.1} parent=1 // pred_check_branch
      %18 = sbr.rel (0) target = $region17
    $region16: #{mlp_forward.1} parent=1 // pred_region
      _
    $region17: #{mlp_forward.1} parent=1 // pred_fallthru
      _
    // Predicated region
    $region18: #{mlp_forward.1} parent=1 // pred_check
      _
    $region19: #{mlp_forward.1} parent=1 // pred_check_branch
      %20 = sbr.rel (0) target = $region21
    $region20: #{mlp_forward.1} parent=1 // pred_region
      _
    $region21: #{mlp_forward.1} parent=1 // pred_fallthru
      _
    %v21 = vld [vmem:[%s0] sm:$0xff]
    %v22 = vld [vmem:[%s1] sm:$0xff]
    %v23 = vld [vmem:[%s1 + $0x8] sm:$0xff]
    %v24 = vld [vmem:[%s1 + $0x10] sm:$0xff]
    %v25 = vld [vmem:[%s1 + $0x18] sm:$0xff]
    %v26 = vld [vmem:[%s2] sm:$0x7]
    %v27 = vlaneseq
    %v28 = vshrl.u32 %v27, 7
    %v29 = vsub.s32 0, %v28
    %v30 = vrot.slane %v26, %v29
    %vm31 = vcmask 261120
    %v33 = vsel %vm31, %v21, 0
    %35 = vmatprep.subr.mxu0 0.0
    %36 = vmatpush1.msra.mxu0 %v22
    %37 = vmatprep.subr.mxu0 0.0
    %38 = vmatpush1.msra.mxu0 %v23
    %39 = vmatprep.subr.mxu0 0.0
    %40 = vmatpush1.msra.mxu0 %v24
    %41 = vmatprep.subr.mxu0 0.0
    %42 = vmatpush1.msra.mxu0 %v25
    %43 = vmatprep.subr.mxu0 0.0
    %44 = vmatpush1.msra.mxu0 0.0
    %45 = vmatprep.subr.mxu0 0.0
    %46 = vmatpush1.msra.mxu0 0.0
    %47 = vmatprep.subr.mxu0 0.0
    %48 = vmatpush1.msra.mxu0 0.0
    %49 = vmatprep.subr.mxu0 0.0
    %50 = vmatpush1.msra.mxu0 0.0
    %51 = vmatprep.subr.mxu0 0.0
    %52 = vmatpush1.msra.mxu0 0.0
    %53 = vmatprep.subr.mxu0 0.0
    %54 = vmatpush1.msra.mxu0 0.0
    %55 = vmatprep.subr.mxu0 0.0
    %56 = vmatpush1.msra.mxu0 0.0
    %57 = vmatprep.subr.mxu0 0.0
    %58 = vmatpush1.msra.mxu0 0.0
    %59 = vmatprep.subr.mxu0 0.0
    %60 = vmatpush1.msra.mxu0 0.0
    %61 = vmatprep.subr.mxu0 0.0
    %62 = vmatpush1.msra.mxu0 0.0
    %63 = vmatprep.subr.mxu0 0.0
    %64 = vmatpush1.msra.mxu0 0.0
    %65 = vmatprep.subr.mxu0 0.0
    %66 = vmatpush1.msra.mxu0 0.0
    %67 = vmatprep.subr.mxu0 0.0
    %68 = vmatpush1.msra.mxu0 0.0
    %69 = vmatprep.subr.mxu0 0.0
    %70 = vmatpush1.msra.mxu0 0.0
    %71 = vmatprep.subr.mxu0 0.0
    %72 = vmatpush1.msra.mxu0 0.0
    %73 = vmatprep.subr.mxu0 0.0
    %74 = vmatpush1.msra.mxu0 0.0
    %75 = vmatprep.subr.mxu0 0.0
    %76 = vmatpush1.msra.mxu0 0.0
    %77 = vmatprep.subr.mxu0 0.0
    %78 = vmatpush1.msra.mxu0 0.0
    %79 = vmatprep.subr.mxu0 0.0
    %80 = vmatpush1.msra.mxu0 0.0
    %81 = vmatprep.subr.mxu0 0.0
    %82 = vmatpush1.msra.mxu0 0.0
    %83 = vmatprep.subr.mxu0 0.0
    %84 = vmatpush1.msra.mxu0 0.0
    %85 = vmatprep.subr.mxu0 0.0
    %86 = vmatpush1.msra.mxu0 0.0
    %87 = vmatprep.subr.mxu0 0.0
    %88 = vmatpush1.msra.mxu0 0.0
    %89 = vmatprep.subr.mxu0 0.0
    %90 = vmatpush1.msra.mxu0 0.0
    %91 = vmatprep.subr.mxu0 0.0
    %92 = vmatpush1.msra.mxu0 0.0
    %93 = vmatprep.subr.mxu0 0.0
    %94 = vmatpush1.msra.mxu0 0.0
    %95 = vmatprep.subr.mxu0 0.0
    %96 = vmatpush1.msra.mxu0 0.0
    %97 = vmatprep.subr.mxu0 0.0
    %98 = vmatpush1.msra.mxu0 0.0
    %99 = vmatprep.mubr.f32.mxu0 0.0
    %100 = vmatmul.mubr.f32.gmra.mrb[0].mxu0 %v33
    %v101 = vpop.f32.mrb[0].mxu0
    %v102 = vadd.f32 %v30, %v101
    %v103 = vpop.f32.mrb[0].mxu0
    %104 = vdwg.mxu0
    %v105 = vmax.f32 %v102, 0.0
    %v106 = vsel %vm31, %v105, 0.0
    %107 = vadd.xlane.f32.xlu0 %v106
    %v108 = vpop.xlane.xlu0 %107
    %v109 = vrcp.pop 32.0
    %v110 = vmul.f32 %v108, %v109
    %v111 = vsub.f32 %v105, %v110
    %v112 = vmul.f32 %v111, %v111
    %v113 = vsel %vm31, %v112, 0.0
    %114 = vadd.xlane.f32.xlu0 %v113
    %v115 = vpop.xlane.xlu0 %114
    %v116 = vmul.f32 %v115, %v109
    %v117 = vadd.f32 %v116, 1e-05
    %v118 = vrsqrt.pop %v117
    %v119 = vmul.f32 %v111, %v118
    %v120 = vlaneseq
    %v121 = vshrl.u32 %v120, 7
    %v122 = vsub.s32 1, %v121
    %v123 = vrot.slane %v26, %v122
    %v124 = vmul.f32 %v119, %v123
    %v125 = vlaneseq
    %v126 = vshrl.u32 %v125, 7
    %v127 = vsub.s32 2, %v126
    %v128 = vrot.slane %v26, %v127
    %v129 = vadd.f32 %v124, %v128
    %s130 = scalar_lea.vmem %s1, 32
    %v131 = vld [vmem:[%s130] sm:$0xff]
    %v132 = vld [vmem:[%s130 + $0x8] sm:$0xff]
    %v133 = vld [vmem:[%s130 + $0x10] sm:$0xff]
    %v134 = vld [vmem:[%s130 + $0x18] sm:$0xff]
    %s135 = scalar_lea.vmem %s2, 4
    %v136 = vld [vmem:[%s135] sm:$0x7]
    %v137 = vlaneseq
    %v138 = vshrl.u32 %v137, 7
    %v139 = vsub.s32 0, %v138
    %v140 = vrot.slane %v136, %v139
    %v142 = vsel %vm31, %v129, 0
    %144 = vmatprep.subr.mxu0 0.0
    %145 = vmatpush1.msra.mxu0 %v131
    %146 = vmatprep.subr.mxu0 0.0
    %147 = vmatpush1.msra.mxu0 %v132
    %148 = vmatprep.subr.mxu0 0.0
    %149 = vmatpush1.msra.mxu0 %v133
    %150 = vmatprep.subr.mxu0 0.0
    %151 = vmatpush1.msra.mxu0 %v134
    %152 = vmatprep.subr.mxu0 0.0
    %153 = vmatpush1.msra.mxu0 0.0
    %154 = vmatprep.subr.mxu0 0.0
    %155 = vmatpush1.msra.mxu0 0.0
    %156 = vmatprep.subr.mxu0 0.0
    %157 = vmatpush1.msra.mxu0 0.0
    %158 = vmatprep.subr.mxu0 0.0
    %159 = vmatpush1.msra.mxu0 0.0
    %160 = vmatprep.subr.mxu0 0.0
    %161 = vmatpush1.msra.mxu0 0.0
    %162 = vmatprep.subr.mxu0 0.0
    %163 = vmatpush1.msra.mxu0 0.0
    %164 = vmatprep.subr.mxu0 0.0
    %165 = vmatpush1.msra.mxu0 0.0
    %166 = vmatprep.subr.mxu0 0.0
    %167 = vmatpush1.msra.mxu0 0.0
    %168 = vmatprep.subr.mxu0 0.0
    %169 = vmatpush1.msra.mxu0 0.0
    %170 = vmatprep.subr.mxu0 0.0
    %171 = vmatpush1.msra.mxu0 0.0
    %172 = vmatprep.subr.mxu0 0.0
    %173 = vmatpush1.msra.mxu0 0.0
    %174 = vmatprep.subr.mxu0 0.0
    %175 = vmatpush1.msra.mxu0 0.0
    %176 = vmatprep.subr.mxu0 0.0
    %177 = vmatpush1.msra.mxu0 0.0
    %178 = vmatprep.subr.mxu0 0.0
    %179 = vmatpush1.msra.mxu0 0.0
    %180 = vmatprep.subr.mxu0 0.0
    %181 = vmatpush1.msra.mxu0 0.0
    %182 = vmatprep.subr.mxu0 0.0
    %183 = vmatpush1.msra.mxu0 0.0
    %184 = vmatprep.subr.mxu0 0.0
    %185 = vmatpush1.msra.mxu0 0.0
    %186 = vmatprep.subr.mxu0 0.0
    %187 = vmatpush1.msra.mxu0 0.0
    %188 = vmatprep.subr.mxu0 0.0
    %189 = vmatpush1.msra.mxu0 0.0
    %190 = vmatprep.subr.mxu0 0.0
    %191 = vmatpush1.msra.mxu0 0.0
    %192 = vmatprep.subr.mxu0 0.0
    %193 = vmatpush1.msra.mxu0 0.0
    %194 = vmatprep.subr.mxu0 0.0
    %195 = vmatpush1.msra.mxu0 0.0
    %196 = vmatprep.subr.mxu0 0.0
    %197 = vmatpush1.msra.mxu0 0.0
    %198 = vmatprep.subr.mxu0 0.0
    %199 = vmatpush1.msra.mxu0 0.0
    %200 = vmatprep.subr.mxu0 0.0
    %201 = vmatpush1.msra.mxu0 0.0
    %202 = vmatprep.subr.mxu0 0.0
    %203 = vmatpush1.msra.mxu0 0.0
    %204 = vmatprep.subr.mxu0 0.0
    %205 = vmatpush1.msra.mxu0 0.0
    %206 = vmatprep.subr.mxu0 0.0
    %207 = vmatpush1.msra.mxu0 0.0
    %208 = vmatprep.mubr.f32.mxu0 0.0
    %209 = vmatmul.mubr.f32.gmra.mrb[0].mxu0 %v142
    %v210 = vpop.f32.mrb[0].mxu0
    %v211 = vadd.f32 %v140, %v210
    %v212 = vpop.f32.mrb[0].mxu0
    %213 = vdwg.mxu0
    %v214 = vmax.f32 %v211, 0.0
    %v215 = vsel %vm31, %v214, 0.0
    %216 = vadd.xlane.f32.xlu0 %v215
    %v217 = vpop.xlane.xlu0 %216
    %v218 = vmul.f32 %v217, %v109
    %v219 = vsub.f32 %v214, %v218
    %v220 = vmul.f32 %v219, %v219
    %v221 = vsel %vm31, %v220, 0.0
    %222 = vadd.xlane.f32.xlu0 %v221
    %v223 = vpop.xlane.xlu0 %222
    %v224 = vmul.f32 %v223, %v109
    %v225 = vadd.f32 %v224, 1e-05
    %v226 = vrsqrt.pop %v225
    %v227 = vmul.f32 %v219, %v226
    %v228 = vlaneseq
    %v229 = vshrl.u32 %v228, 7
    %v230 = vsub.s32 1, %v229
    %v231 = vrot.slane %v136, %v230
    %v232 = vmul.f32 %v227, %v231
    %v233 = vlaneseq
    %v234 = vshrl.u32 %v233, 7
    %v235 = vsub.s32 2, %v234
    %v236 = vrot.slane %v136, %v235
    %v237 = vadd.f32 %v232, %v236
    %v238 = vld [vmem:[%s3] sm:$0xff]
    %v239 = vld [vmem:[%s3 + $0x8] sm:$0xff]
    %v240 = vld [vmem:[%s3 + $0x10] sm:$0xff]
    %v241 = vld [vmem:[%s3 + $0x18] sm:$0xff]
    %v242 = vld [vmem:[%s4] sm:$0x1]
    %v244 = vlaneseq
    %v245 = vshrl.u32 %v244, 7
    %v246 = vsub.s32 0, %v245
    %v247 = vrot.slane %v242, %v246
    %v250 = vsel %vm31, %v237, 0
    %252 = vmatprep.subr.mxu0 0.0
    %253 = vmatpush1.msra.mxu0 %v238
    %254 = vmatprep.subr.mxu0 0.0
    %255 = vmatpush1.msra.mxu0 %v239
    %256 = vmatprep.subr.mxu0 0.0
    %257 = vmatpush1.msra.mxu0 %v240
    %258 = vmatprep.subr.mxu0 0.0
    %259 = vmatpush1.msra.mxu0 %v241
    %260 = vmatprep.subr.mxu0 0.0
    %261 = vmatpush1.msra.mxu0 0.0
    %262 = vmatprep.subr.mxu0 0.0
    %263 = vmatpush1.msra.mxu0 0.0
    %264 = vmatprep.subr.mxu0 0.0
    %265 = vmatpush1.msra.mxu0 0.0
    %266 = vmatprep.subr.mxu0 0.0
    %267 = vmatpush1.msra.mxu0 0.0
    %268 = vmatprep.subr.mxu0 0.0
    %269 = vmatpush1.msra.mxu0 0.0
    %270 = vmatprep.subr.mxu0 0.0
    %271 = vmatpush1.msra.mxu0 0.0
    %272 = vmatprep.subr.mxu0 0.0
    %273 = vmatpush1.msra.mxu0 0.0
    %274 = vmatprep.subr.mxu0 0.0
    %275 = vmatpush1.msra.mxu0 0.0
    %276 = vmatprep.subr.mxu0 0.0
    %277 = vmatpush1.msra.mxu0 0.0
    %278 = vmatprep.subr.mxu0 0.0
    %279 = vmatpush1.msra.mxu0 0.0
    %280 = vmatprep.subr.mxu0 0.0
    %281 = vmatpush1.msra.mxu0 0.0
    %282 = vmatprep.subr.mxu0 0.0
    %283 = vmatpush1.msra.mxu0 0.0
    %284 = vmatprep.subr.mxu0 0.0
    %285 = vmatpush1.msra.mxu0 0.0
    %286 = vmatprep.subr.mxu0 0.0
    %287 = vmatpush1.msra.mxu0 0.0
    %288 = vmatprep.subr.mxu0 0.0
    %289 = vmatpush1.msra.mxu0 0.0
    %290 = vmatprep.subr.mxu0 0.0
    %291 = vmatpush1.msra.mxu0 0.0
    %292 = vmatprep.subr.mxu0 0.0
    %293 = vmatpush1.msra.mxu0 0.0
    %294 = vmatprep.subr.mxu0 0.0
    %295 = vmatpush1.msra.mxu0 0.0
    %296 = vmatprep.subr.mxu0 0.0
    %297 = vmatpush1.msra.mxu0 0.0
    %298 = vmatprep.subr.mxu0 0.0
    %299 = vmatpush1.msra.mxu0 0.0
    %300 = vmatprep.subr.mxu0 0.0
    %301 = vmatpush1.msra.mxu0 0.0
    %302 = vmatprep.subr.mxu0 0.0
    %303 = vmatpush1.msra.mxu0 0.0
    %304 = vmatprep.subr.mxu0 0.0
    %305 = vmatpush1.msra.mxu0 0.0
    %306 = vmatprep.subr.mxu0 0.0
    %307 = vmatpush1.msra.mxu0 0.0
    %308 = vmatprep.subr.mxu0 0.0
    %309 = vmatpush1.msra.mxu0 0.0
    %310 = vmatprep.subr.mxu0 0.0
    %311 = vmatpush1.msra.mxu0 0.0
    %312 = vmatprep.subr.mxu0 0.0
    %313 = vmatpush1.msra.mxu0 0.0
    %314 = vmatprep.subr.mxu0 0.0
    %315 = vmatpush1.msra.mxu0 0.0
    %316 = vmatprep.mubr.f32.mxu0 0.0
    %317 = vmatmul.mubr.f32.gmra.mrb[0].mxu0 %v250
    %v318 = vpop.f32.mrb[0].mxu0
    %v319 = vadd.f32 %v247, %v318
    %v320 = vpop.f32.mrb[0].mxu0
    %321 = vdwg.mxu0
    %vm322 = vcmask 130048
    %323 = vst.msk [vmem:[#allocation2] sm:$0xff] %vm322, %v319
    // Predicated region
    $region22: #{mlp_forward.1} parent=1 // pred_check
      _
    $region23: #{mlp_forward.1} parent=1 // pred_check_branch
      %325 = sbr.rel (0) target = $region25
    $region24: #{mlp_forward.1} parent=1 // pred_region
      %s327 = ssub.s32 128, 128
      %328 = vsyncadd [#allocation3], %s327
      %s330 = sshll.u32 [#allocation2], 4
      %s331 = int_to_ptr.vmem [resolvable:$true] %s330
      %333 = dma.vmem_to_hbm [thread:$0]  %s331, 128, %s5, [#allocation3]
    $region25: #{mlp_forward.1} parent=1 // pred_fallthru
      _
    // Predicated region
    $region26: #{mlp_forward.1} parent=1 // pred_check
      _
    $region27: #{mlp_forward.1} parent=1 // pred_check_branch
      %335 = sbr.rel (0) target = $region29
    $region28: #{mlp_forward.1} parent=1 // pred_region
      %336 = dma.done [#allocation3], 128
    $region29: #{mlp_forward.1} parent=1 // pred_fallthru
      _
    %337 = vsyncpa [#allocation3], 1

</llo_original>
